<compile_context>
chip_gen: v7x
topology: tpu7x:2x2x1
jax: 0.10.0
libtpu: 0.0.40
codegen_flags: <defaults>
</compile_context>

<pallas_src>
import functools

import jax
import jax.numpy as jnp
from jax.experimental import pallas as pl
from jax.experimental.pallas import tpu as pltpu


def _round_up(x: int, m: int) -> int:
    return (x + m - 1) // m * m


def _cdiv(a: int, b: int) -> int:
    return -(-a // b)


def _batch_tiling(batch: int, block_b: int):
    """Batch tile TB (multiple of 8) and padded batch B_pad = TB * n_tiles,
    sized to avoid near-2x over-padding at awkward batch sizes."""
    b8 = _round_up(max(batch, 1), 8)
    n_tiles = max(1, _cdiv(b8, block_b))
    tb = _round_up(_cdiv(b8, n_tiles), 8)
    return tb, tb * n_tiles


def _vmem_limit(nbytes: int):
    if nbytes <= 12 * 1024 * 1024:
        return None  # comfortably under the smallest default scoped VMEM limit
    return int(min(nbytes, 100 * 1024 * 1024))


# ----------------------------------------------------------------------------
# Kernels
# ----------------------------------------------------------------------------
def gru_cell_kernel(u_ref, h_ref, wu_ref, wh_ref, b_ref, out_ref):
    """u_ref: (TB, I); h_ref: (TB, Hp); wu_ref: (I, 3Hp); wh_ref: (Hp, 3Hp);
    b_ref: (1, 3Hp) f32. Gate blocks are padded to Hp -> lane-aligned slices."""
    hp = h_ref.shape[1]
    h = h_ref[...]

    # Two fused MXU dots with f32 accumulation; operands stay in native dtype.
    gates = (
        jnp.dot(u_ref[...], wu_ref[...], preferred_element_type=jnp.float32)
        + jnp.dot(h, wh_ref[...], preferred_element_type=jnp.float32)
        + b_ref[...]
    )

    h32 = h.astype(jnp.float32)
    rz = jax.nn.sigmoid(gates[:, : 2 * hp])        # one call over a contiguous slab
    r = rz[:, :hp]
    z = rz[:, hp:]
    # Non-standard GRU: n = tanh(W_n[u,h] + r*h)  (matches the PyTorch module).
    n = jnp.tanh(gates[:, 2 * hp:] + r * h32)
    out_ref[...] = (n + z * (h32 - n)).astype(out_ref.dtype)


def gru_seq_kernel(ug_ref, h0_ref, wh_ref, hseq_ref, h_state):
    """Whole-sequence recurrence; h stays VMEM-resident in h_state.
    ug_ref: (1, TB, 3Hp) precomputed u-gates (incl. bias, f32);
    h0_ref: (TB, Hp); wh_ref: (Hp, 3Hp); hseq_ref: (1, TB, Hp)."""
    hp = h_state.shape[1]

    @pl.when(pl.program_id(1) == 0)
    def _():
        h_state[...] = h0_ref[...].astype(jnp.float32)

    h = h_state[...]
    gates = ug_ref[0] + jnp.dot(h.astype(wh_ref.dtype), wh_ref[...],
                                preferred_element_type=jnp.float32)
    rz = jax.nn.sigmoid(gates[:, : 2 * hp])
    r = rz[:, :hp]
    z = rz[:, hp:]
    n = jnp.tanh(gates[:, 2 * hp:] + r * h)
    h_new = n + z * (h - n)
    h_state[...] = h_new
    hseq_ref[0] = h_new.astype(hseq_ref.dtype)


# ----------------------------------------------------------------------------
# One-time parameter / state preparation (hoisted out of the hot path)
# ----------------------------------------------------------------------------
def prepare_gru_params(W, b, input_size: int, hidden_size: int, *, param_dtype=None):
    """W: (3H, I+H) nn.Linear weight, b: (3H,).
    Returns Wu: (I, 3Hp), Wh: (Hp, 3Hp), bias: (1, 3Hp) f32, with each gate's
    column block zero-padded to Hp (lane-aligned slices in the kernel).
    Pass param_dtype=jnp.bfloat16 on v6e/v7x for ~2x MXU throughput."""
    I, H = input_size, hidden_size
    K = I + H
    assert W.shape == (3 * H, K) and b.shape == (3 * H,)
    Hp = _round_up(H, 128)
    wdt = W.dtype if param_dtype is None else param_dtype

    Wt = W.T.astype(wdt)                               # (K, 3H)
    Wu = jnp.zeros((I, 3 * Hp), dtype=wdt)
    Wh = jnp.zeros((Hp, 3 * Hp), dtype=wdt)
    bp = jnp.zeros((1, 3 * Hp), dtype=jnp.float32)
    for g in range(3):
        Wu = Wu.at[:, g * Hp: g * Hp + H].set(Wt[:I, g * H:(g + 1) * H])
        Wh = Wh.at[:H, g * Hp: g * Hp + H].set(Wt[I:, g * H:(g + 1) * H])
        bp = bp.at[0, g * Hp: g * Hp + H].set(b[g * H:(g + 1) * H].astype(jnp.float32))
    return Wu, Wh, bp


def pad_state(h, *, block_b: int = 512):
    """Pad h (B, H) once to the persistent (B_pad, Hp) recurrent layout."""
    B, H = h.shape
    _, B_pad = _batch_tiling(B, block_b)
    Hp = _round_up(H, 128)
    if (B_pad, Hp) == (B, H):
        return h
    return jnp.zeros((B_pad, Hp), dtype=h.dtype).at[:B, :H].set(h)


def unpad_state(h_pad, batch: int, hidden_size: int):
    return h_pad[:batch, :hidden_size]


# ----------------------------------------------------------------------------
# Per-step forward (state stays in the padded layout across steps)
# ----------------------------------------------------------------------------
@functools.partial(jax.jit, static_argnames=("block_b",))
def gru_cell_forward(u, h_pad, Wu_p, Wh_p, bp, *, block_b: int = 512):
    """u: (B, I); h_pad: (B_pad, Hp) padded state. Returns new (B_pad, Hp) state."""
    B, I = u.shape
    B_pad, Hp = h_pad.shape
    TB, B_pad_expect = _batch_tiling(B, block_b)
    if B_pad_expect != B_pad:
        raise ValueError("h_pad batch padding does not match block_b tiling")

    if B_pad != B:
        u = jnp.zeros((B_pad, I), dtype=u.dtype).at[:B].set(u)

    w_item = jnp.dtype(Wh_p.dtype).itemsize
    a_item = jnp.dtype(h_pad.dtype).itemsize
    est = (((I + Hp) * 3 * Hp + 3 * Hp) * w_item * 2        # weights (double-buffered)
           + TB * (I + 2 * Hp) * a_item * 2                 # streamed u / h / out tiles
           + TB * 3 * Hp * 4 * 3                            # f32 gates + temporaries
           + (2 << 20))

    grid = (B_pad // TB,)
    out = pl.pallas_call(
        gru_cell_kernel,
        out_shape=jax.ShapeDtypeStruct((B_pad, Hp), h_pad.dtype),
        grid=grid,
        in_specs=[
            pl.BlockSpec((TB, I), lambda i: (i, 0)),          # streamed u
            pl.BlockSpec((TB, Hp), lambda i: (i, 0)),         # streamed h
            pl.BlockSpec((I, 3 * Hp), lambda i: (0, 0)),      # Wu: VMEM-resident
            pl.BlockSpec((Hp, 3 * Hp), lambda i: (0, 0)),     # Wh: VMEM-resident
            pl.BlockSpec((1, 3 * Hp), lambda i: (0, 0)),      # bias: VMEM-resident
        ],
        out_specs=pl.BlockSpec((TB, Hp), lambda i: (i, 0)),
        # Reuse the padded h buffer as the output buffer on the recurrent path.
        input_output_aliases={1: 0},
        compiler_params=pltpu.CompilerParams(
            dimension_semantics=("parallel",),
            vmem_limit_bytes=_vmem_limit(est),
        ),
    )(u, h_pad, Wu_p, Wh_p, bp)
    return out


# ----------------------------------------------------------------------------
# Whole-sequence forward: u-projection hoisted, h held in VMEM scratch
# ----------------------------------------------------------------------------
@functools.partial(jax.jit, static_argnames=("block_b",))
def gru_sequence_forward(u_seq, h0_pad, Wu_p, Wh_p, bp, *, block_b: int = 512):
    """u_seq: (T, B, I); h0_pad: (B_pad, Hp). Returns (T, B_pad, Hp) hidden states."""
    T, B, I = u_seq.shape
    B_pad, Hp = h0_pad.shape
    TB, B_pad_expect = _batch_tiling(B, block_b)
    if B_pad_expect != B_pad:
        raise ValueError("h0_pad batch padding does not match block_b tiling")

    # Hoisted input projection: one big matmul + bias, outside the recurrence.
    ug = jnp.dot(u_seq.reshape(T * B, I), Wu_p,
                 preferred_element_type=jnp.float32) + bp
    ug = ug.reshape(T, B, 3 * Hp)
    if B_pad != B:
        ug = jnp.zeros((T, B_pad, 3 * Hp), jnp.float32).at[:, :B, :].set(ug)

    w_item = jnp.dtype(Wh_p.dtype).itemsize
    a_item = jnp.dtype(h0_pad.dtype).itemsize
    est = (Hp * 3 * Hp * w_item * 2                          # Wh (double-buffered)
           + TB * 3 * Hp * 4 * 2                             # streamed u-gates tiles
           + TB * Hp * a_item * 4                            # h0 + out tiles
           + TB * Hp * 4                                     # h scratch
           + TB * 3 * Hp * 4 * 2                             # f32 temporaries
           + (2 << 20))

    grid = (B_pad // TB, T)                                  # T last ("arbitrary")
    h_seq = pl.pallas_call(
        gru_seq_kernel,
        out_shape=jax.ShapeDtypeStruct((T, B_pad, Hp), h0_pad.dtype),
        grid=grid,
        in_specs=[
            pl.BlockSpec((1, TB, 3 * Hp), lambda i, t: (t, i, 0)),  # u-gates per step
            pl.BlockSpec((TB, Hp), lambda i, t: (i, 0)),            # h0 (read at t==0)
            pl.BlockSpec((Hp, 3 * Hp), lambda i, t: (0, 0)),        # Wh resident
        ],
        out_specs=pl.BlockSpec((1, TB, Hp), lambda i, t: (t, i, 0)),
        scratch_shapes=[pltpu.VMEM((TB, Hp), jnp.float32)],         # VMEM-resident h
        compiler_params=pltpu.CompilerParams(
            dimension_semantics=("parallel", "arbitrary"),
            vmem_limit_bytes=_vmem_limit(est),
        ),
    )(ug, h0_pad, Wh_p)
    return h_seq


# ----------------------------------------------------------------------------
# Pure-JAX references (mirror the PyTorch module exactly)
# ----------------------------------------------------------------------------
def gru_cell_reference(u, h, W, b):
    gates = jnp.concatenate([u, h], axis=1) @ W.T + b
    H = h.shape[1]
    r = jax.nn.sigmoid(gates[:, :H])
    z = jax.nn.sigmoid(gates[:, H:2 * H])
    n = jnp.tanh(gates[:, 2 * H:] + r * h)
    return (1.0 - z) * n + z * h


def gru_sequence_reference(u_seq, h0, W, b):
    h = h0
    outs = []
    for t in range(u_seq.shape[0]):
        h = gru_cell_reference(u_seq[t], h, W, b)
        outs.append(h)
    return jnp.stack(outs, axis=0)


if __name__ == "__main__":
    batch = 6            # deliberately not a multiple of 8: exercises batch padding
    input_size = 16
    hidden_size = 32
    seq_len = 5

    key = jax.random.PRNGKey(0)
    k_u, k_h, k_w, k_b, k_us = jax.random.split(key, 5)

    u = jax.random.normal(k_u, (batch, input_size), dtype=jnp.float32)
    h = jax.random.normal(k_h, (batch, hidden_size), dtype=jnp.float32)
    u_seq = jax.random.normal(k_us, (seq_len, batch, input_size), dtype=jnp.float32)

    # nn.Linear-style init: U(-1/sqrt(fan_in), +1/sqrt(fan_in))
    fan_in = input_size + hidden_size
    bound = 1.0 / (fan_in ** 0.5)
    W = jax.random.uniform(k_w, (3 * hidden_size, fan_in),
                           minval=-bound, maxval=bound, dtype=jnp.float32)
    b = jax.random.uniform(k_b, (3 * hidden_size,),
                           minval=-bound, maxval=bound, dtype=jnp.float32)

    # One-time parameter prep (outside the per-step path).
    Wu_p, Wh_p, bp = prepare_gru_params(W, b, input_size, hidden_size)

    # --- single step (module forward) ---
    h_pad = pad_state(h)
    h_new_pad = jax.block_until_ready(gru_cell_forward(u, h_pad, Wu_p, Wh_p, bp))
    h_new = unpad_state(h_new_pad, batch, hidden_size)
    h_ref = gru_cell_reference(u, h, W, b)
    assert h_new.shape == (batch, hidden_size)
    step_err = float(jnp.max(jnp.abs(h_new - h_ref)))
    assert step_err < 1e-4, step_err

    # --- whole sequence (h held in VMEM scratch across all steps) ---
    hseq_pad = jax.block_until_ready(
        gru_sequence_forward(u_seq, pad_state(h), Wu_p, Wh_p, bp))
    hseq = hseq_pad[:, :batch, :hidden_size]
    hseq_ref = gru_sequence_reference(u_seq, h, W, b)
    seq_err = float(jnp.max(jnp.abs(hseq - hseq_ref)))
    assert seq_err < 1e-4, seq_err

    print("KERNEL_OK")
</pallas_src>

<mosaic_0001>
module attributes {stable_mosaic.version = 11 : i64} {
  func.func @gru_cell_kernel(%arg0: i32, %arg1: memref<8x16xf32, #tpu.memory_space<vmem>>, %arg2: memref<8x128xf32, #tpu.memory_space<vmem>>, %arg3: memref<16x384xf32, #tpu.memory_space<vmem>>, %arg4: memref<128x384xf32, #tpu.memory_space<vmem>>, %arg5: memref<1x384xf32, #tpu.memory_space<vmem>>, %arg6: memref<8x128xf32, #tpu.memory_space<vmem>>) attributes {dimension_semantics = [#tpu.dimension_semantics<parallel>], iteration_bounds = array<i64: 1>, scalar_prefetch = 0 : i64, scratch_operands = 0 : i64, tpu.core_type = #tpu.core_type<tc>, window_params = [{transform_indices = @transform_0, window_bounds = array<i64: 8, 16>}, {transform_indices = @transform_1, window_bounds = array<i64: 8, 128>}, {pipeline_mode = #tpu.pipeline_mode<synchronous>, transform_indices = @transform_2, window_bounds = array<i64: 16, 384>}, {pipeline_mode = #tpu.pipeline_mode<synchronous>, transform_indices = @transform_3, window_bounds = array<i64: 128, 384>}, {pipeline_mode = #tpu.pipeline_mode<synchronous>, transform_indices = @transform_4, window_bounds = array<i64: 1, 384>}, {transform_indices = @transform_5, window_bounds = array<i64: 8, 128>}]} {
    %c0 = arith.constant 0 : index
    %c0_0 = arith.constant 0 : index
    %0 = vector.load %arg2[%c0, %c0_0] : memref<8x128xf32, #tpu.memory_space<vmem>>, vector<8x128xf32>
    %c0_1 = arith.constant 0 : index
    %c0_2 = arith.constant 0 : index
    %1 = vector.load %arg1[%c0_1, %c0_2] : memref<8x16xf32, #tpu.memory_space<vmem>>, vector<8x16xf32>
    %c0_3 = arith.constant 0 : index
    %c0_4 = arith.constant 0 : index
    %2 = vector.load %arg3[%c0_3, %c0_4] : memref<16x384xf32, #tpu.memory_space<vmem>>, vector<16x384xf32>
    %cst = arith.constant dense<0.000000e+00> : vector<8x384xf32>
    %3 = tpu.matmul %1, %2, %cst {dimension_numbers = #tpu.dot_dimension_numbers<[1], [0], [0], [1], [0, 0, 1, 1], [], []>} : vector<8x16xf32>, vector<16x384xf32>, vector<8x384xf32> -> vector<8x384xf32>
    %c0_5 = arith.constant 0 : index
    %c0_6 = arith.constant 0 : index
    %4 = vector.load %arg4[%c0_5, %c0_6] : memref<128x384xf32, #tpu.memory_space<vmem>>, vector<128x384xf32>
    %cst_7 = arith.constant dense<0.000000e+00> : vector<8x384xf32>
    %5 = tpu.matmul %0, %4, %cst_7 {dimension_numbers = #tpu.dot_dimension_numbers<[1], [0], [0], [1], [0, 0, 1, 1], [], []>} : vector<8x128xf32>, vector<128x384xf32>, vector<8x384xf32> -> vector<8x384xf32>
    %6 = arith.addf %3, %5 : vector<8x384xf32>
    %c0_8 = arith.constant 0 : index
    %c0_9 = arith.constant 0 : index
    %7 = vector.load %arg5[%c0_8, %c0_9] : memref<1x384xf32, #tpu.memory_space<vmem>>, vector<1x384xf32>
    %8 = vector.broadcast %7 : vector<1x384xf32> to vector<8x384xf32>
    %9 = arith.addf %6, %8 : vector<8x384xf32>
    %10 = vector.extract_strided_slice %9 {offsets = [0, 0], sizes = [8, 256], strides = [1, 1]} : vector<8x384xf32> to vector<8x256xf32>
    %11 = arith.negf %10 : vector<8x256xf32>
    %12 = math.exp %11 : vector<8x256xf32>
    %cst_10 = arith.constant 1.000000e+00 : f32
    %13 = vector.broadcast %cst_10 : f32 to vector<8x256xf32>
    %14 = arith.addf %13, %12 : vector<8x256xf32>
    %15 = arith.divf %13, %14 : vector<8x256xf32>
    %16 = vector.extract_strided_slice %15 {offsets = [0, 0], sizes = [8, 128], strides = [1, 1]} : vector<8x256xf32> to vector<8x128xf32>
    %17 = vector.extract_strided_slice %15 {offsets = [0, 128], sizes = [8, 128], strides = [1, 1]} : vector<8x256xf32> to vector<8x128xf32>
    %18 = vector.extract_strided_slice %9 {offsets = [0, 256], sizes = [8, 128], strides = [1, 1]} : vector<8x384xf32> to vector<8x128xf32>
    %19 = arith.mulf %16, %0 : vector<8x128xf32>
    %20 = arith.addf %18, %19 : vector<8x128xf32>
    %21 = math.tanh %20 : vector<8x128xf32>
    %22 = arith.subf %0, %21 : vector<8x128xf32>
    %23 = arith.mulf %17, %22 : vector<8x128xf32>
    %24 = arith.addf %21, %23 : vector<8x128xf32>
    %c0_11 = arith.constant 0 : index
    %c0_12 = arith.constant 0 : index
    %25 = vector.load %arg6[%c0_11, %c0_12] : memref<8x128xf32, #tpu.memory_space<vmem>>, vector<8x128xf32>
    tpu.vector_store %arg6[%c0_11, %c0_12], %24 {strides = array<i32>} : memref<8x128xf32, #tpu.memory_space<vmem>>, vector<8x128xf32>,
    return
  }
  func.func @transform_0(%arg0: i32) -> (i32, i32) {
    %c0_i32 = arith.constant 0 : i32
    %c0_i32_0 = arith.constant 0 : i32
    return %arg0, %c0_i32 : i32, i32
  }
  func.func @transform_1(%arg0: i32) -> (i32, i32) {
    %c0_i32 = arith.constant 0 : i32
    %c0_i32_0 = arith.constant 0 : i32
    return %arg0, %c0_i32 : i32, i32
  }
  func.func @transform_2(%arg0: i32) -> (i32, i32) {
    %c0_i32 = arith.constant 0 : i32
    %c0_i32_0 = arith.constant 0 : i32
    %c0_i32_1 = arith.constant 0 : i32
    return %c0_i32, %c0_i32_0 : i32, i32
  }
  func.func @transform_3(%arg0: i32) -> (i32, i32) {
    %c0_i32 = arith.constant 0 : i32
    %c0_i32_0 = arith.constant 0 : i32
    %c0_i32_1 = arith.constant 0 : i32
    return %c0_i32, %c0_i32_0 : i32, i32
  }
  func.func @transform_4(%arg0: i32) -> (i32, i32) {
    %c0_i32 = arith.constant 0 : i32
    %c0_i32_0 = arith.constant 0 : i32
    %c0_i32_1 = arith.constant 0 : i32
    return %c0_i32, %c0_i32_0 : i32, i32
  }
  func.func @transform_5(%arg0: i32) -> (i32, i32) {
    %c0_i32 = arith.constant 0 : i32
    %c0_i32_0 = arith.constant 0 : i32
    return %arg0, %c0_i32 : i32, i32
  }
}

</mosaic_0001>

<llo_original>
// kernel: gru_cell_forward.1
$region0: #{gru_cell_forward.1}
  #allocation0 [shape = 'u32[]', space=smem, size = 0x4, offset = 0x4, fixed_abs, tag = 'smem constant byte address 0x4 - core index']
  #allocation1 [shape = 'u32[144,128]{1,0:T(1,128)}', space=vmem, size = 0x12000, scoped, tag = 'internal scratch']
  %s0 = inlined_call_operand.vmem [shape: f32[8,16], index: 0, kind: input, shape index: {}]
  %s1 = inlined_call_operand.hbm [shape: f32[8,128], index: 1, kind: input, shape index: {}, may-alias: {1,5}]
  %s2 = inlined_call_operand.hbm [shape: f32[16,384], index: 2, kind: input, shape index: {}]
  %s3 = inlined_call_operand.hbm [shape: f32[128,384], index: 3, kind: input, shape index: {}]
  %s4 = inlined_call_operand.vmem [shape: f32[1,384], index: 4, kind: input, shape index: {}]
  %s5 = inlined_call_operand.hbm [shape: f32[8,128], index: 5, kind: output, shape index: {}, may-alias: {1,5}]
  %s6 = sld [smem:[#allocation0]]
  $region42: #{gru_cell_forward.1} parent=0
    _
  %s8 = ssub.s32 1, %s6
  %s9 = scalar_select 0, %s8, %s6
  $region1: #{gru_cell_forward.1} parent=0
    #allocation2 [shape = 'u8[4096]{0}', space=vmem, size = 0x1000, scoped, tag = 'input window, operand 1, single buffered']
    #allocation3 [shape = 's32[1]{0}', space=sflag, size = 0x4, scoped, tag = 'scoped memory for gru_cell_forward.1']
    #allocation4 [shape = 's32[1]{0}', space=sflag, size = 0x4, scoped, tag = 'scoped memory for gru_cell_forward.1']
    #allocation5 [shape = 'u8[24576]{0}', space=vmem, size = 0x6000, scoped, tag = 'input window, operand 2, single buffered']
    #allocation6 [shape = 's32[1]{0}', space=sflag, size = 0x4, scoped, tag = 'scoped memory for gru_cell_forward.1']
    #allocation7 [shape = 'u8[196608]{0}', space=vmem, size = 0x30000, scoped, tag = 'input window, operand 3, single buffered']
    #allocation8 [shape = 'u8[4096]{0}', space=vmem, size = 0x1000, scoped, tag = 'output window, operand 0, single buffered']
    %10 = vsyncpa [#allocation3], 0
    %11 = vsyncpa [#allocation6], 0
    %12 = vsyncpa [#allocation4], 0
    // Predicated region
    $region2: #{gru_cell_forward.1} parent=1 // pred_check
      _
    $region3: #{gru_cell_forward.1} parent=1 // pred_check_branch
      %14 = sbr.rel (0) target = $region5
    $region4: #{gru_cell_forward.1} parent=1 // pred_region
      _
    $region5: #{gru_cell_forward.1} parent=1 // pred_fallthru
      _
    // Predicated region
    $region6: #{gru_cell_forward.1} parent=1 // pred_check
      _
    $region7: #{gru_cell_forward.1} parent=1 // pred_check_branch
      %16 = sbr.rel (0) target = $region9
    $region8: #{gru_cell_forward.1} parent=1 // pred_region
      %s18 = ssub.s32 128, 128
      %19 = vsyncadd [#allocation3], %s18
      %s21 = sshll.u32 [#allocation2], 4
      %s22 = int_to_ptr.vmem [resolvable:$true] %s21
      %24 = dma.hbm_to_vmem [thread:$0]  %s1, 128, %s22, [#allocation3]
    $region9: #{gru_cell_forward.1} parent=1 // pred_fallthru
      _
    // Predicated region
    $region10: #{gru_cell_forward.1} parent=1 // pred_check
      _
    $region11: #{gru_cell_forward.1} parent=1 // pred_check_branch
      %26 = sbr.rel (0) target = $region13
    $region12: #{gru_cell_forward.1} parent=1 // pred_region
      %s28 = ssub.s32 768, 768
      %29 = vsyncadd [#allocation6], %s28
      %s30 = sshll.u32 [#allocation5], 4
      %s31 = int_to_ptr.vmem [resolvable:$true] %s30
      %36 = dma.hbm_to_vmem [thread:$0]  %s2, 768, %s31, [#allocation6], 384, 384, 24
    $region13: #{gru_cell_forward.1} parent=1 // pred_fallthru
      _
    // Predicated region
    $region14: #{gru_cell_forward.1} parent=1 // pred_check
      _
    $region15: #{gru_cell_forward.1} parent=1 // pred_check_branch
      %38 = sbr.rel (0) target = $region17
    $region16: #{gru_cell_forward.1} parent=1 // pred_region
      %s40 = ssub.s32 6144, 6144
      %41 = vsyncadd [#allocation6], %s40
      %s42 = sshll.u32 [#allocation7], 4
      %s43 = int_to_ptr.vmem [resolvable:$true] %s42
      %48 = dma.hbm_to_vmem [thread:$0]  %s3, 6144, %s43, [#allocation6], 384, 384, 24
    $region17: #{gru_cell_forward.1} parent=1 // pred_fallthru
      _
    // Predicated region
    $region18: #{gru_cell_forward.1} parent=1 // pred_check
      _
    $region19: #{gru_cell_forward.1} parent=1 // pred_check_branch
      %50 = sbr.rel (0) target = $region21
    $region20: #{gru_cell_forward.1} parent=1 // pred_region
      _
    $region21: #{gru_cell_forward.1} parent=1 // pred_fallthru
      _
    // Predicated region
    $region22: #{gru_cell_forward.1} parent=1 // pred_check
      _
    $region23: #{gru_cell_forward.1} parent=1 // pred_check_branch
      %52 = sbr.rel (0) target = $region25
    $region24: #{gru_cell_forward.1} parent=1 // pred_region
      %53 = dma.done [#allocation3], 128
    $region25: #{gru_cell_forward.1} parent=1 // pred_fallthru
      _
    // Predicated region
    $region26: #{gru_cell_forward.1} parent=1 // pred_check
      _
    $region27: #{gru_cell_forward.1} parent=1 // pred_check_branch
      %55 = sbr.rel (0) target = $region29
    $region28: #{gru_cell_forward.1} parent=1 // pred_region
      %56 = dma.done [#allocation6], 768
    $region29: #{gru_cell_forward.1} parent=1 // pred_fallthru
      _
    // Predicated region
    $region30: #{gru_cell_forward.1} parent=1 // pred_check
      _
    $region31: #{gru_cell_forward.1} parent=1 // pred_check_branch
      %58 = sbr.rel (0) target = $region33
    $region32: #{gru_cell_forward.1} parent=1 // pred_region
      %59 = dma.done [#allocation6], 6144
    $region33: #{gru_cell_forward.1} parent=1 // pred_fallthru
      _
    %v60 = vld [vmem:[#allocation2] sm:$0xff]
    %v61 = vld [vmem:[%s0] sm:$0xff]
    %v62 = vld [vmem:[#allocation5] sm:$0xff]
    %v63 = vld [vmem:[#allocation5 + $0x8] sm:$0xff]
    %v64 = vld [vmem:[#allocation5 + $0x10] sm:$0xff]
    %v65 = vld [vmem:[#allocation5 + $0x18] sm:$0xff]
    %v66 = vld [vmem:[#allocation5 + $0x20] sm:$0xff]
    %v67 = vld [vmem:[#allocation5 + $0x28] sm:$0xff]
    %v68 = vld [vmem:[#allocation7] sm:$0xff]
    %v69 = vld [vmem:[#allocation7 + $0x8] sm:$0xff]
    %v70 = vld [vmem:[#allocation7 + $0x10] sm:$0xff]
    %v71 = vld [vmem:[#allocation7 + $0x18] sm:$0xff]
    %v72 = vld [vmem:[#allocation7 + $0x20] sm:$0xff]
    %v73 = vld [vmem:[#allocation7 + $0x28] sm:$0xff]
    %v74 = vld [vmem:[#allocation7 + $0x30] sm:$0xff]
    %v75 = vld [vmem:[#allocation7 + $0x38] sm:$0xff]
    %v76 = vld [vmem:[#allocation7 + $0x40] sm:$0xff]
    %v77 = vld [vmem:[#allocation7 + $0x48] sm:$0xff]
    %v78 = vld [vmem:[#allocation7 + $0x50] sm:$0xff]
    %v79 = vld [vmem:[#allocation7 + $0x58] sm:$0xff]
    %v80 = vld [vmem:[#allocation7 + $0x60] sm:$0xff]
    %v81 = vld [vmem:[#allocation7 + $0x68] sm:$0xff]
    %v82 = vld [vmem:[#allocation7 + $0x70] sm:$0xff]
    %v83 = vld [vmem:[#allocation7 + $0x78] sm:$0xff]
    %v84 = vld [vmem:[#allocation7 + $0x80] sm:$0xff]
    %v85 = vld [vmem:[#allocation7 + $0x88] sm:$0xff]
    %v86 = vld [vmem:[#allocation7 + $0x90] sm:$0xff]
    %v87 = vld [vmem:[#allocation7 + $0x98] sm:$0xff]
    %v88 = vld [vmem:[#allocation7 + $0xa0] sm:$0xff]
    %v89 = vld [vmem:[#allocation7 + $0xa8] sm:$0xff]
    %v90 = vld [vmem:[#allocation7 + $0xb0] sm:$0xff]
    %v91 = vld [vmem:[#allocation7 + $0xb8] sm:$0xff]
    %v92 = vld [vmem:[#allocation7 + $0xc0] sm:$0xff]
    %v93 = vld [vmem:[#allocation7 + $0xc8] sm:$0xff]
    %v94 = vld [vmem:[#allocation7 + $0xd0] sm:$0xff]
    %v95 = vld [vmem:[#allocation7 + $0xd8] sm:$0xff]
    %v96 = vld [vmem:[#allocation7 + $0xe0] sm:$0xff]
    %v97 = vld [vmem:[#allocation7 + $0xe8] sm:$0xff]
    %v98 = vld [vmem:[#allocation7 + $0xf0] sm:$0xff]
    %v99 = vld [vmem:[#allocation7 + $0xf8] sm:$0xff]
    %v100 = vld [vmem:[#allocation7 + $0x100] sm:$0xff]
    %v101 = vld [vmem:[#allocation7 + $0x108] sm:$0xff]
    %v102 = vld [vmem:[#allocation7 + $0x110] sm:$0xff]
    %v103 = vld [vmem:[#allocation7 + $0x118] sm:$0xff]
    %v104 = vld [vmem:[#allocation7 + $0x120] sm:$0xff]
    %v105 = vld [vmem:[#allocation7 + $0x128] sm:$0xff]
    %v106 = vld [vmem:[#allocation7 + $0x130] sm:$0xff]
    %v107 = vld [vmem:[#allocation7 + $0x138] sm:$0xff]
    %v108 = vld [vmem:[#allocation7 + $0x140] sm:$0xff]
    %v109 = vld [vmem:[#allocation7 + $0x148] sm:$0xff]
    %v110 = vld [vmem:[#allocation7 + $0x150] sm:$0xff]
    %v111 = vld [vmem:[#allocation7 + $0x158] sm:$0xff]
    %v112 = vld [vmem:[#allocation7 + $0x160] sm:$0xff]
    %v113 = vld [vmem:[#allocation7 + $0x168] sm:$0xff]
    %v114 = vld [vmem:[#allocation7 + $0x170] sm:$0xff]
    %v115 = vld [vmem:[#allocation7 + $0x178] sm:$0xff]
    %116 = vmatprep.subr.mxu0 %v69
    %117 = vmatpush1.msra.mxu0 %v68
    %118 = vmatprep.subr.mxu0 %v72
    %119 = vmatpush1.msra.mxu0 %v71
    %120 = vmatprep.subr.mxu0 %v75
    %121 = vmatpush1.msra.mxu0 %v74
    %122 = vmatprep.subr.mxu0 %v78
    %123 = vmatpush1.msra.mxu0 %v77
    %124 = vmatprep.subr.mxu0 %v81
    %125 = vmatpush1.msra.mxu0 %v80
    %126 = vmatprep.subr.mxu0 %v84
    %127 = vmatpush1.msra.mxu0 %v83
    %128 = vmatprep.subr.mxu0 %v87
    %129 = vmatpush1.msra.mxu0 %v86
    %130 = vmatprep.subr.mxu0 %v90
    %131 = vmatpush1.msra.mxu0 %v89
    %132 = vmatprep.subr.mxu0 %v93
    %133 = vmatpush1.msra.mxu0 %v92
    %134 = vmatprep.subr.mxu0 %v96
    %135 = vmatpush1.msra.mxu0 %v95
    %136 = vmatprep.subr.mxu0 %v99
    %137 = vmatpush1.msra.mxu0 %v98
    %138 = vmatprep.subr.mxu0 %v102
    %139 = vmatpush1.msra.mxu0 %v101
    %140 = vmatprep.subr.mxu0 %v105
    %141 = vmatpush1.msra.mxu0 %v104
    %142 = vmatprep.subr.mxu0 %v108
    %143 = vmatpush1.msra.mxu0 %v107
    %144 = vmatprep.subr.mxu0 %v111
    %145 = vmatpush1.msra.mxu0 %v110
    %146 = vmatprep.subr.mxu0 %v114
    %147 = vmatpush1.msra.mxu0 %v113
    %148 = vmatprep.subr.mxu0 0.0
    %149 = vmatpush1.msra.mxu0 0.0
    %150 = vmatprep.subr.mxu0 0.0
    %151 = vmatpush1.msra.mxu0 0.0
    %152 = vmatprep.subr.mxu0 0.0
    %153 = vmatpush1.msra.mxu0 0.0
    %154 = vmatprep.subr.mxu0 0.0
    %155 = vmatpush1.msra.mxu0 0.0
    %156 = vmatprep.subr.mxu0 0.0
    %157 = vmatpush1.msra.mxu0 0.0
    %158 = vmatprep.subr.mxu0 0.0
    %159 = vmatpush1.msra.mxu0 0.0
    %160 = vmatprep.subr.mxu0 0.0
    %161 = vmatpush1.msra.mxu0 0.0
    %162 = vmatprep.subr.mxu0 0.0
    %163 = vmatpush1.msra.mxu0 0.0
    %164 = vmatprep.subr.mxu0 0.0
    %165 = vmatpush1.msra.mxu0 0.0
    %166 = vmatprep.subr.mxu0 0.0
    %167 = vmatpush1.msra.mxu0 0.0
    %168 = vmatprep.subr.mxu0 0.0
    %169 = vmatpush1.msra.mxu0 0.0
    %170 = vmatprep.subr.mxu0 0.0
    %171 = vmatpush1.msra.mxu0 0.0
    %172 = vmatprep.subr.mxu0 0.0
    %173 = vmatpush1.msra.mxu0 0.0
    %174 = vmatprep.subr.mxu0 0.0
    %175 = vmatpush1.msra.mxu0 0.0
    %176 = vmatprep.subr.mxu0 0.0
    %177 = vmatpush1.msra.mxu0 0.0
    %178 = vmatprep.subr.mxu0 0.0
    %179 = vmatpush1.msra.mxu0 0.0
    %180 = vmatprep.mubr.f32.mxu0 0.0
    %181 = vmatmul.mubr.f32.gmra.mrb[0].mxu0 %v60
    %v182 = vpop.f32.mrb[0].mxu0
    %v183 = vadd.f32 0.0, %v182
    %v184 = vpop.f32.mrb[0].mxu0
    %v185 = vadd.f32 0.0, %v184
    %186 = vdwg.mxu0
    %187 = vmatprep.subr.mxu0 0.0
    %188 = vmatpush1.msra.mxu0 %v70
    %189 = vmatprep.subr.mxu0 0.0
    %190 = vmatpush1.msra.mxu0 %v73
    %191 = vmatprep.subr.mxu0 0.0
    %192 = vmatpush1.msra.mxu0 %v76
    %193 = vmatprep.subr.mxu0 0.0
    %194 = vmatpush1.msra.mxu0 %v79
    %195 = vmatprep.subr.mxu0 0.0
    %196 = vmatpush1.msra.mxu0 %v82
    %197 = vmatprep.subr.mxu0 0.0
    %198 = vmatpush1.msra.mxu0 %v85
    %199 = vmatprep.subr.mxu0 0.0
    %200 = vmatpush1.msra.mxu0 %v88
    %201 = vmatprep.subr.mxu0 0.0
    %202 = vmatpush1.msra.mxu0 %v91
    %203 = vmatprep.subr.mxu0 0.0
    %204 = vmatpush1.msra.mxu0 %v94
    %205 = vmatprep.subr.mxu0 0.0
    %206 = vmatpush1.msra.mxu0 %v97
    %207 = vmatprep.subr.mxu0 0.0
    %208 = vmatpush1.msra.mxu0 %v100
    %209 = vmatprep.subr.mxu0 0.0
    %210 = vmatpush1.msra.mxu0 %v103
    %211 = vmatprep.subr.mxu0 0.0
    %212 = vmatpush1.msra.mxu0 %v106
    %213 = vmatprep.subr.mxu0 0.0
    %214 = vmatpush1.msra.mxu0 %v109
    %215 = vmatprep.subr.mxu0 0.0
    %216 = vmatpush1.msra.mxu0 %v112
    %217 = vmatprep.subr.mxu0 0.0
    %218 = vmatpush1.msra.mxu0 %v115
    %219 = vmatprep.subr.mxu0 0.0
    %220 = vmatpush1.msra.mxu0 0.0
    %221 = vmatprep.subr.mxu0 0.0
    %222 = vmatpush1.msra.mxu0 0.0
    %223 = vmatprep.subr.mxu0 0.0
    %224 = vmatpush1.msra.mxu0 0.0
    %225 = vmatprep.subr.mxu0 0.0
    %226 = vmatpush1.msra.mxu0 0.0
    %227 = vmatprep.subr.mxu0 0.0
    %228 = vmatpush1.msra.mxu0 0.0
    %229 = vmatprep.subr.mxu0 0.0
    %230 = vmatpush1.msra.mxu0 0.0
    %231 = vmatprep.subr.mxu0 0.0
    %232 = vmatpush1.msra.mxu0 0.0
    %233 = vmatprep.subr.mxu0 0.0
    %234 = vmatpush1.msra.mxu0 0.0
    %235 = vmatprep.subr.mxu0 0.0
    %236 = vmatpush1.msra.mxu0 0.0
    %237 = vmatprep.subr.mxu0 0.0
    %238 = vmatpush1.msra.mxu0 0.0
    %239 = vmatprep.subr.mxu0 0.0
    %240 = vmatpush1.msra.mxu0 0.0
    %241 = vmatprep.subr.mxu0 0.0
    %242 = vmatpush1.msra.mxu0 0.0
    %243 = vmatprep.subr.mxu0 0.0
    %244 = vmatpush1.msra.mxu0 0.0
    %245 = vmatprep.subr.mxu0 0.0
    %246 = vmatpush1.msra.mxu0 0.0
    %247 = vmatprep.subr.mxu0 0.0
    %248 = vmatpush1.msra.mxu0 0.0
    %249 = vmatprep.subr.mxu0 0.0
    %250 = vmatpush1.msra.mxu0 0.0
    %251 = vmatprep.mubr.f32.mxu0 0.0
    %252 = vmatmul.mubr.f32.gmra.mrb[0].mxu0 %v60
    %v253 = vpop.f32.mrb[0].mxu0
    %v254 = vadd.f32 0.0, %v253
    %v255 = vpop.f32.mrb[0].mxu0
    %256 = vdwg.mxu0
    %vm257 = vcmask 130048
    %v259 = vsel %vm257, %v61, 0
    %261 = vmatprep.subr.mxu0 %v63
    %262 = vmatpush1.msra.mxu0 %v62
    %263 = vmatprep.subr.mxu0 %v66
    %264 = vmatpush1.msra.mxu0 %v65
    %265 = vmatprep.subr.mxu0 0.0
    %266 = vmatpush1.msra.mxu0 0.0
    %267 = vmatprep.subr.mxu0 0.0
    %268 = vmatpush1.msra.mxu0 0.0
    %269 = vmatprep.subr.mxu0 0.0
    %270 = vmatpush1.msra.mxu0 0.0
    %271 = vmatprep.subr.mxu0 0.0
    %272 = vmatpush1.msra.mxu0 0.0
    %273 = vmatprep.subr.mxu0 0.0
    %274 = vmatpush1.msra.mxu0 0.0
    %275 = vmatprep.subr.mxu0 0.0
    %276 = vmatpush1.msra.mxu0 0.0
    %277 = vmatprep.subr.mxu0 0.0
    %278 = vmatpush1.msra.mxu0 0.0
    %279 = vmatprep.subr.mxu0 0.0
    %280 = vmatpush1.msra.mxu0 0.0
    %281 = vmatprep.subr.mxu0 0.0
    %282 = vmatpush1.msra.mxu0 0.0
    %283 = vmatprep.subr.mxu0 0.0
    %284 = vmatpush1.msra.mxu0 0.0
    %285 = vmatprep.subr.mxu0 0.0
    %286 = vmatpush1.msra.mxu0 0.0
    %287 = vmatprep.subr.mxu0 0.0
    %288 = vmatpush1.msra.mxu0 0.0
    %289 = vmatprep.subr.mxu0 0.0
    %290 = vmatpush1.msra.mxu0 0.0
    %291 = vmatprep.subr.mxu0 0.0
    %292 = vmatpush1.msra.mxu0 0.0
    %293 = vmatprep.subr.mxu0 0.0
    %294 = vmatpush1.msra.mxu0 0.0
    %295 = vmatprep.subr.mxu0 0.0
    %296 = vmatpush1.msra.mxu0 0.0
    %297 = vmatprep.subr.mxu0 0.0
    %298 = vmatpush1.msra.mxu0 0.0
    %299 = vmatprep.subr.mxu0 0.0
    %300 = vmatpush1.msra.mxu0 0.0
    %301 = vmatprep.subr.mxu0 0.0
    %302 = vmatpush1.msra.mxu0 0.0
    %303 = vmatprep.subr.mxu0 0.0
    %304 = vmatpush1.msra.mxu0 0.0
    %305 = vmatprep.subr.mxu0 0.0
    %306 = vmatpush1.msra.mxu0 0.0
    %307 = vmatprep.subr.mxu0 0.0
    %308 = vmatpush1.msra.mxu0 0.0
    %309 = vmatprep.subr.mxu0 0.0
    %310 = vmatpush1.msra.mxu0 0.0
    %311 = vmatprep.subr.mxu0 0.0
    %312 = vmatpush1.msra.mxu0 0.0
    %313 = vmatprep.subr.mxu0 0.0
    %314 = vmatpush1.msra.mxu0 0.0
    %315 = vmatprep.subr.mxu0 0.0
    %316 = vmatpush1.msra.mxu0 0.0
    %317 = vmatprep.subr.mxu0 0.0
    %318 = vmatpush1.msra.mxu0 0.0
    %319 = vmatprep.subr.mxu0 0.0
    %320 = vmatpush1.msra.mxu0 0.0
    %321 = vmatprep.subr.mxu0 0.0
    %322 = vmatpush1.msra.mxu0 0.0
    %323 = vmatprep.subr.mxu0 0.0
    %324 = vmatpush1.msra.mxu0 0.0
    %325 = vmatprep.mubr.f32.mxu0 0.0
    %326 = vmatmul.mubr.f32.gmra.mrb[0].mxu0 %v259
    %v327 = vpop.f32.mrb[0].mxu0
    %v328 = vadd.f32 %v183, %v327
    %v329 = vpop.f32.mrb[0].mxu0
    %v330 = vadd.f32 %v185, %v329
    %331 = vdwg.mxu0
    %332 = vmatprep.subr.mxu0 0.0
    %333 = vmatpush1.msra.mxu0 %v64
    %334 = vmatprep.subr.mxu0 0.0
    %335 = vmatpush1.msra.mxu0 %v67
    %336 = vmatprep.subr.mxu0 0.0
    %337 = vmatpush1.msra.mxu0 0.0
    %338 = vmatprep.subr.mxu0 0.0
    %339 = vmatpush1.msra.mxu0 0.0
    %340 = vmatprep.subr.mxu0 0.0
    %341 = vmatpush1.msra.mxu0 0.0
    %342 = vmatprep.subr.mxu0 0.0
    %343 = vmatpush1.msra.mxu0 0.0
    %344 = vmatprep.subr.mxu0 0.0
    %345 = vmatpush1.msra.mxu0 0.0
    %346 = vmatprep.subr.mxu0 0.0
    %347 = vmatpush1.msra.mxu0 0.0
    %348 = vmatprep.subr.mxu0 0.0
    %349 = vmatpush1.msra.mxu0 0.0
    %350 = vmatprep.subr.mxu0 0.0
    %351 = vmatpush1.msra.mxu0 0.0
    %352 = vmatprep.subr.mxu0 0.0
    %353 = vmatpush1.msra.mxu0 0.0
    %354 = vmatprep.subr.mxu0 0.0
    %355 = vmatpush1.msra.mxu0 0.0
    %356 = vmatprep.subr.mxu0 0.0
    %357 = vmatpush1.msra.mxu0 0.0
    %358 = vmatprep.subr.mxu0 0.0
    %359 = vmatpush1.msra.mxu0 0.0
    %360 = vmatprep.subr.mxu0 0.0
    %361 = vmatpush1.msra.mxu0 0.0
    %362 = vmatprep.subr.mxu0 0.0
    %363 = vmatpush1.msra.mxu0 0.0
    %364 = vmatprep.subr.mxu0 0.0
    %365 = vmatpush1.msra.mxu0 0.0
    %366 = vmatprep.subr.mxu0 0.0
    %367 = vmatpush1.msra.mxu0 0.0
    %368 = vmatprep.subr.mxu0 0.0
    %369 = vmatpush1.msra.mxu0 0.0
    %370 = vmatprep.subr.mxu0 0.0
    %371 = vmatpush1.msra.mxu0 0.0
    %372 = vmatprep.subr.mxu0 0.0
    %373 = vmatpush1.msra.mxu0 0.0
    %374 = vmatprep.subr.mxu0 0.0
    %375 = vmatpush1.msra.mxu0 0.0
    %376 = vmatprep.subr.mxu0 0.0
    %377 = vmatpush1.msra.mxu0 0.0
    %378 = vmatprep.subr.mxu0 0.0
    %379 = vmatpush1.msra.mxu0 0.0
    %380 = vmatprep.subr.mxu0 0.0
    %381 = vmatpush1.msra.mxu0 0.0
    %382 = vmatprep.subr.mxu0 0.0
    %383 = vmatpush1.msra.mxu0 0.0
    %384 = vmatprep.subr.mxu0 0.0
    %385 = vmatpush1.msra.mxu0 0.0
    %386 = vmatprep.subr.mxu0 0.0
    %387 = vmatpush1.msra.mxu0 0.0
    %388 = vmatprep.subr.mxu0 0.0
    %389 = vmatpush1.msra.mxu0 0.0
    %390 = vmatprep.subr.mxu0 0.0
    %391 = vmatpush1.msra.mxu0 0.0
    %392 = vmatprep.subr.mxu0 0.0
    %393 = vmatpush1.msra.mxu0 0.0
    %394 = vmatprep.subr.mxu0 0.0
    %395 = vmatpush1.msra.mxu0 0.0
    %396 = vmatprep.mubr.f32.mxu0 0.0
    %397 = vmatmul.mubr.f32.gmra.mrb[0].mxu0 %v259
    %v398 = vpop.f32.mrb[0].mxu0
    %v399 = vadd.f32 %v254, %v398
    %v400 = vpop.f32.mrb[0].mxu0
    %401 = vdwg.mxu0
    %v402 = vld [vmem:[%s4] sm:$0x7]
    %v404 = vlaneseq
    %v405 = vshrl.u32 %v404, 7
    %v406 = vsub.s32 0, %v405
    %v407 = vrot.slane %v402, %v406
    %v408 = vlaneseq
    %v409 = vshrl.u32 %v408, 7
    %v410 = vsub.s32 1, %v409
    %v411 = vrot.slane %v402, %v410
    %v412 = vlaneseq
    %v413 = vshrl.u32 %v412, 7
    %v414 = vsub.s32 2, %v413
    %v415 = vrot.slane %v402, %v414
    %v419 = vadd.f32 %v328, %v407
    %v420 = vadd.f32 %v330, %v411
    %v421 = vadd.f32 %v399, %v415
    %v422 = vxor.u32 %v419, 2147483648
    %v423 = vxor.u32 %v420, 2147483648
    %v424 = vmul.f32 %v422, 1.442695
    %v425 = vpow.pop %v424
    %v426 = vmul.f32 %v423, 1.442695
    %v427 = vpow.pop %v426
    %v428 = vadd.f32 %v425, 1.0
    %v429 = vadd.f32 %v427, 1.0
    %v430 = vrcp.pop %v428
    %v431 = vmul.f32 1.0, %v430
    %v432 = vrcp.pop %v429
    %v433 = vmul.f32 1.0, %v432
    %v434 = vmul.f32 %v431, %v60
    %v435 = vadd.f32 %v421, %v434
    %v436 = vtanh.pop %v435
    %v437 = vsub.f32 %v60, %v436
    %v438 = vmul.f32 %v433, %v437
    %v439 = vadd.f32 %v436, %v438
    %440 = vst [vmem:[#allocation8] sm:$0xff] %v439
    // Predicated region
    $region34: #{gru_cell_forward.1} parent=1 // pred_check
      _
    $region35: #{gru_cell_forward.1} parent=1 // pred_check_branch
      %442 = sbr.rel (0) target = $region37
    $region36: #{gru_cell_forward.1} parent=1 // pred_region
      %s444 = ssub.s32 128, 128
      %445 = vsyncadd [#allocation4], %s444
      %s447 = sshll.u32 [#allocation8], 4
      %s448 = int_to_ptr.vmem [resolvable:$true] %s447
      %450 = dma.vmem_to_hbm [thread:$0]  %s448, 128, %s5, [#allocation4]
    $region37: #{gru_cell_forward.1} parent=1 // pred_fallthru
      _
    // Predicated region
    $region38: #{gru_cell_forward.1} parent=1 // pred_check
      _
    $region39: #{gru_cell_forward.1} parent=1 // pred_check_branch
      %452 = sbr.rel (0) target = $region41
    $region40: #{gru_cell_forward.1} parent=1 // pred_region
      %453 = dma.done [#allocation4], 128
    $region41: #{gru_cell_forward.1} parent=1 // pred_fallthru
      _
    %454 = vsyncpa [#allocation3], 1
    %455 = vsyncpa [#allocation6], 1
    %456 = vsyncpa [#allocation4], 1

</llo_original>
